<compile_context>
chip_gen: v6e
topology: v6e:2x2x1
jax: 0.10.0
libtpu: 0.0.40
codegen_flags: <defaults>
</compile_context>

<pallas_src>
import functools

import jax
import jax.numpy as jnp
from jax.experimental import pallas as pl
from jax.experimental.pallas import tpu as pltpu


_ACTIVATIONS = {
    "relu": lambda h: jnp.maximum(h, 0.0),
    "leaky_relu": lambda h: jnp.where(h > 0, h, 0.01 * h),
    "tanh": jnp.tanh,
    "sigmoid": jax.nn.sigmoid,
}


def _get_activation(name):
    if name is None:
        return lambda h: h
    return _ACTIVATIONS[name]


def _critic_mlp_kernel(x_ref, w1_ref, b1_ref, w2_ref, b2_ref, w3_ref, b3_ref,
                       o_ref, *, activation):
    act = _get_activation(activation)
    mxu_dtype = w1_ref.dtype          # bf16 by default; MXU-operand-only cast

    # No-op if the caller already feeds bf16 x (recommended: halves x's HBM traffic).
    x = x_ref[...].astype(mxu_dtype)

    # Layer 1: Linear + activation (MXU matmul, f32 accumulate, f32 elementwise).
    h = jnp.dot(x, w1_ref[...], preferred_element_type=jnp.float32)
    h = act(h + b1_ref[...])

    # Layer 2: Linear + activation.
    h = jnp.dot(h.astype(mxu_dtype), w2_ref[...], preferred_element_type=jnp.float32)
    h = act(h + b2_ref[...])

    # Head Linear(H2 -> 1): N=1 matmul replaced with VPU multiply + lane reduce.
    q = jnp.sum(h * w3_ref[...], axis=-1, keepdims=True) + b3_ref[...]

    o_ref[...] = q.astype(o_ref.dtype)


def _round_down(v, m):
    return (v // m) * m


def _pick_batch_tile(batch, tile_b, x_dtype):
    """Largest sublane-aligned tile <= tile_b, with >=2 grid steps when the batch allows
    (so the 'parallel' batch axis shards across both v7x TensorCores)."""
    # Sublane granularity of the x block depends on dtype packing (f32: 8, bf16: 16).
    gran = max(8, 32 // jnp.dtype(x_dtype).itemsize)
    if batch <= gran:
        return batch                          # one block covering the whole (tiny) batch
    tb = min(tile_b, batch)
    if batch >= 2 * gran:
        tb = min(tb, -(-batch // 2))          # guarantee >=2 grid steps
    return max(gran, _round_down(tb, gran))


def critic_net_forward(x, params, *, tile_b=4096, activation="relu"):
    """x: (B, input_dim), f32 or bf16 (bf16 preferred upstream: halves x's HBM traffic).
    params: see init_critic_params. Returns (B, 1) float32."""
    w1, b1 = params["w1"], params["b1"]
    w2, b2 = params["w2"], params["b2"]
    w3, b3 = params["w3"], params["b3"]
    B, din = x.shape
    h1, h2 = w1.shape[1], w2.shape[1]

    tb = _pick_batch_tile(B, tile_b, x.dtype)
    grid = (pl.cdiv(B, tb),)   # no jnp.pad: Pallas masks the (discarded) edge-block rows

    x_spec = pl.BlockSpec((tb, din), lambda i: (i, 0))
    out_spec = pl.BlockSpec((tb, 1), lambda i: (i, 0))
    # Constant index_maps + single buffering => weights/biases DMA'd once, VMEM-resident.
    resident = lambda shape: pl.BlockSpec(shape, lambda i: (0, 0),
                                          pipeline_mode=pl.Buffered(1))

    n_rows = grid[0] * tb
    flops = 2 * n_rows * (din * h1 + h1 * h2 + h2)
    transcendentals = n_rows * (h1 + h2) if activation in ("tanh", "sigmoid") else 0
    bytes_accessed = (
        x.size * x.dtype.itemsize
        + sum(p.size * p.dtype.itemsize for p in (w1, b1, w2, b2, w3, b3))
        + B * 4
    )

    return pl.pallas_call(
        functools.partial(_critic_mlp_kernel, activation=activation),
        out_shape=jax.ShapeDtypeStruct((B, 1), jnp.float32),
        grid=grid,
        in_specs=[
            x_spec,
            resident(w1.shape), resident(b1.shape),
            resident(w2.shape), resident(b2.shape),
            resident(w3.shape), resident(b3.shape),
        ],
        out_specs=out_spec,
        compiler_params=pltpu.CompilerParams(
            dimension_semantics=("parallel",),
        ),
        cost_estimate=pl.CostEstimate(
            flops=flops, transcendentals=transcendentals,
            bytes_accessed=bytes_accessed),
    )(x, w1, b1, w2, b2, w3, b3)


def init_critic_params(key, input_dim, hidden_sizes, mxu_dtype=jnp.bfloat16):
    """Deterministic synthetic init. Weights stored (in_dim, out_dim) — transposed
    vs. nn.Linear's (out, in). Hidden weights in `mxu_dtype` (MXU operands only);
    head weight (stored as a (1, H_last) row) and all biases stay float32."""
    dims = [input_dim] + list(hidden_sizes) + [1]
    params = {}
    for i in range(len(dims) - 1):
        key, wk = jax.random.split(key)
        fan_in, fan_out = dims[i], dims[i + 1]
        w = jax.random.normal(wk, (fan_in, fan_out), jnp.float32) * (2.0 / fan_in) ** 0.5
        b = jnp.zeros((1, fan_out), jnp.float32)               # nn.init.constant_(bias, 0)
        if i < len(dims) - 2:
            params[f"w{i + 1}"] = w.astype(mxu_dtype)
            params[f"b{i + 1}"] = b
        else:
            params[f"w{i + 1}"] = w.T                           # (1, H_last), f32, VPU reduce
            params[f"b{i + 1}"] = b                             # (1, 1)
    return params


def critic_net_reference(x, params, activation="relu"):
    """Plain-JAX reference performing the same math (bf16 MXU operands, f32 accum)."""
    act = _get_activation(activation)
    cdt = params["w1"].dtype
    h = jnp.dot(x.astype(cdt), params["w1"], preferred_element_type=jnp.float32)
    h = act(h + params["b1"])
    h = jnp.dot(h.astype(cdt), params["w2"], preferred_element_type=jnp.float32)
    h = act(h + params["b2"])
    return jnp.sum(h * params["w3"], axis=-1, keepdims=True) + params["b3"]


if __name__ == "__main__":
    key = jax.random.PRNGKey(0)
    batch = 300               # deliberately not a tile multiple: exercises the unpadded
                              # edge-block (masked output store) path
    input_dim = 48            # e.g. concatenated (obs, joint-action) for the Q critic
    hidden_sizes = (64, 64)

    key, xk = jax.random.split(key)
    # "Upstream emits bf16" path: x arrives in bf16, no wrapper-side cast is added.
    x = jax.random.normal(xk, (batch, input_dim), jnp.float32).astype(jnp.bfloat16)
    params = init_critic_params(key, input_dim, hidden_sizes)

    q = critic_net_forward(x, params)          # tb=144 here -> grid of 3 parallel steps
    q = jax.block_until_ready(q)

    q_ref = critic_net_reference(x, params)
    assert q.shape == (batch, 1)
    assert jnp.allclose(q, q_ref, atol=1e-3, rtol=1e-3), "mismatch vs reference"

    print("KERNEL_OK")
</pallas_src>

<mosaic_0001>
module attributes {stable_mosaic.version = 11 : i64} {
  func.func @_critic_mlp_kernel(%arg0: i32, %arg1: memref<144x48xbf16, #tpu.memory_space<vmem>>, %arg2: memref<48x64xbf16, #tpu.memory_space<vmem>>, %arg3: memref<1x64xf32, #tpu.memory_space<vmem>>, %arg4: memref<64x64xbf16, #tpu.memory_space<vmem>>, %arg5: memref<1x64xf32, #tpu.memory_space<vmem>>, %arg6: memref<1x64xf32, #tpu.memory_space<vmem>>, %arg7: memref<1x1xf32, #tpu.memory_space<vmem>>, %arg8: memref<144x1xf32, #tpu.memory_space<vmem>>) attributes {dimension_semantics = [#tpu.dimension_semantics<parallel>], iteration_bounds = array<i64: 3>, scalar_prefetch = 0 : i64, scratch_operands = 0 : i64, tpu.core_type = #tpu.core_type<tc>, window_params = [{transform_indices = @transform_0, window_bounds = array<i64: 144, 48>}, {pipeline_mode = #tpu.pipeline_mode<synchronous>, transform_indices = @transform_1, window_bounds = array<i64: 48, 64>}, {pipeline_mode = #tpu.pipeline_mode<synchronous>, transform_indices = @transform_2, window_bounds = array<i64: 1, 64>}, {pipeline_mode = #tpu.pipeline_mode<synchronous>, transform_indices = @transform_3, window_bounds = array<i64: 64, 64>}, {pipeline_mode = #tpu.pipeline_mode<synchronous>, transform_indices = @transform_4, window_bounds = array<i64: 1, 64>}, {pipeline_mode = #tpu.pipeline_mode<synchronous>, transform_indices = @transform_5, window_bounds = array<i64: 1, 64>}, {pipeline_mode = #tpu.pipeline_mode<synchronous>, transform_indices = @transform_6, window_bounds = array<i64: 1, 1>}, {transform_indices = @transform_7, window_bounds = array<i64: 144, 1>}]} {
    %c0 = arith.constant 0 : index
    %c0_0 = arith.constant 0 : index
    %0 = vector.load %arg1[%c0, %c0_0] : memref<144x48xbf16, #tpu.memory_space<vmem>>, vector<144x48xbf16>
    %c0_1 = arith.constant 0 : index
    %c0_2 = arith.constant 0 : index
    %1 = vector.load %arg2[%c0_1, %c0_2] : memref<48x64xbf16, #tpu.memory_space<vmem>>, vector<48x64xbf16>
    %cst = arith.constant dense<0.000000e+00> : vector<144x64xf32>
    %2 = tpu.matmul %0, %1, %cst {dimension_numbers = #tpu.dot_dimension_numbers<[1], [0], [0], [1], [0, 0, 1, 1], [], []>} : vector<144x48xbf16>, vector<48x64xbf16>, vector<144x64xf32> -> vector<144x64xf32>
    %c0_3 = arith.constant 0 : index
    %c0_4 = arith.constant 0 : index
    %3 = vector.load %arg3[%c0_3, %c0_4] : memref<1x64xf32, #tpu.memory_space<vmem>>, vector<1x64xf32>
    %4 = vector.broadcast %3 : vector<1x64xf32> to vector<144x64xf32>
    %5 = arith.addf %2, %4 : vector<144x64xf32>
    %cst_5 = arith.constant 0.000000e+00 : f32
    %6 = vector.broadcast %cst_5 : f32 to vector<144x64xf32>
    %7 = arith.maximumf %5, %6 : vector<144x64xf32>
    %8 = arith.truncf %7 : vector<144x64xf32> to vector<144x64xbf16>
    %c0_6 = arith.constant 0 : index
    %c0_7 = arith.constant 0 : index
    %9 = vector.load %arg4[%c0_6, %c0_7] : memref<64x64xbf16, #tpu.memory_space<vmem>>, vector<64x64xbf16>
    %cst_8 = arith.constant dense<0.000000e+00> : vector<144x64xf32>
    %10 = tpu.matmul %8, %9, %cst_8 {dimension_numbers = #tpu.dot_dimension_numbers<[1], [0], [0], [1], [0, 0, 1, 1], [], []>} : vector<144x64xbf16>, vector<64x64xbf16>, vector<144x64xf32> -> vector<144x64xf32>
    %c0_9 = arith.constant 0 : index
    %c0_10 = arith.constant 0 : index
    %11 = vector.load %arg5[%c0_9, %c0_10] : memref<1x64xf32, #tpu.memory_space<vmem>>, vector<1x64xf32>
    %12 = vector.broadcast %11 : vector<1x64xf32> to vector<144x64xf32>
    %13 = arith.addf %10, %12 : vector<144x64xf32>
    %cst_11 = arith.constant 0.000000e+00 : f32
    %14 = vector.broadcast %cst_11 : f32 to vector<144x64xf32>
    %15 = arith.maximumf %13, %14 : vector<144x64xf32>
    %c0_12 = arith.constant 0 : index
    %c0_13 = arith.constant 0 : index
    %16 = vector.load %arg6[%c0_12, %c0_13] : memref<1x64xf32, #tpu.memory_space<vmem>>, vector<1x64xf32>
    %17 = vector.broadcast %16 : vector<1x64xf32> to vector<144x64xf32>
    %18 = arith.mulf %15, %17 : vector<144x64xf32>
    %cst_14 = arith.constant dense<0.000000e+00> : vector<144xf32>
    %19 = vector.multi_reduction <add>, %18, %cst_14 [1] : vector<144x64xf32> to vector<144xf32>
    %20 = vector.shape_cast %19 : vector<144xf32> to vector<144x1xf32>
    %c0_15 = arith.constant 0 : index
    %c0_16 = arith.constant 0 : index
    %21 = vector.load %arg7[%c0_15, %c0_16] : memref<1x1xf32, #tpu.memory_space<vmem>>, vector<1x1xf32>
    %22 = vector.broadcast %21 : vector<1x1xf32> to vector<144x1xf32>
    %23 = arith.addf %20, %22 : vector<144x1xf32>
    %c0_17 = arith.constant 0 : index
    %c0_18 = arith.constant 0 : index
    %24 = vector.load %arg8[%c0_17, %c0_18] : memref<144x1xf32, #tpu.memory_space<vmem>>, vector<144x1xf32>
    tpu.vector_store %arg8[%c0_17, %c0_18], %23 {strides = array<i32>} : memref<144x1xf32, #tpu.memory_space<vmem>>, vector<144x1xf32>,
    return
  }
  func.func @transform_0(%arg0: i32) -> (i32, i32) {
    %c0_i32 = arith.constant 0 : i32
    %c0_i32_0 = arith.constant 0 : i32
    return %arg0, %c0_i32 : i32, i32
  }
  func.func @transform_1(%arg0: i32) -> (i32, i32) {
    %c0_i32 = arith.constant 0 : i32
    %c0_i32_0 = arith.constant 0 : i32
    %c0_i32_1 = arith.constant 0 : i32
    return %c0_i32, %c0_i32_0 : i32, i32
  }
  func.func @transform_2(%arg0: i32) -> (i32, i32) {
    %c0_i32 = arith.constant 0 : i32
    %c0_i32_0 = arith.constant 0 : i32
    %c0_i32_1 = arith.constant 0 : i32
    return %c0_i32, %c0_i32_0 : i32, i32
  }
  func.func @transform_3(%arg0: i32) -> (i32, i32) {
    %c0_i32 = arith.constant 0 : i32
    %c0_i32_0 = arith.constant 0 : i32
    %c0_i32_1 = arith.constant 0 : i32
    return %c0_i32, %c0_i32_0 : i32, i32
  }
  func.func @transform_4(%arg0: i32) -> (i32, i32) {
    %c0_i32 = arith.constant 0 : i32
    %c0_i32_0 = arith.constant 0 : i32
    %c0_i32_1 = arith.constant 0 : i32
    return %c0_i32, %c0_i32_0 : i32, i32
  }
  func.func @transform_5(%arg0: i32) -> (i32, i32) {
    %c0_i32 = arith.constant 0 : i32
    %c0_i32_0 = arith.constant 0 : i32
    %c0_i32_1 = arith.constant 0 : i32
    return %c0_i32, %c0_i32_0 : i32, i32
  }
  func.func @transform_6(%arg0: i32) -> (i32, i32) {
    %c0_i32 = arith.constant 0 : i32
    %c0_i32_0 = arith.constant 0 : i32
    %c0_i32_1 = arith.constant 0 : i32
    return %c0_i32, %c0_i32_0 : i32, i32
  }
  func.func @transform_7(%arg0: i32) -> (i32, i32) {
    %c0_i32 = arith.constant 0 : i32
    %c0_i32_0 = arith.constant 0 : i32
    return %arg0, %c0_i32 : i32, i32
  }
}

</mosaic_0001>

<llo_original>
// kernel: tpu_custom_call.1
$region0: #{tpu_custom_call.1}
  #allocation0 [shape = 'u32[]', space=smem, size = 0x4, offset = 0x4, fixed_abs, tag = 'smem constant byte address 0x4 - core index']
  #allocation1 [shape = 'u32[144,128]{1,0:T(1,128)}', space=vmem, size = 0x12000, scoped, tag = 'internal scratch']
  #allocation2 [shape = 'f32[1,1]{1,0:T(1,128)S(1)}', space=vmem, size = 0x200, scoped, tag = 'scoped memory for tpu_custom_call.1']
  %s0 = inlined_call_operand.vmem [shape: bf16[300,48], index: 0, kind: input, shape index: {}]
  %s1 = inlined_call_operand.vmem [shape: bf16[48,64], index: 1, kind: input, shape index: {}]
  %s2 = inlined_call_operand.vmem [shape: f32[1,64], index: 2, kind: input, shape index: {}]
  %s3 = inlined_call_operand.vmem [shape: bf16[64,64], index: 3, kind: input, shape index: {}]
  %s4 = inlined_call_operand.vmem [shape: f32[1,64], index: 4, kind: input, shape index: {}]
  %s5 = inlined_call_operand.vmem [shape: f32[1,64], index: 5, kind: input, shape index: {}]
  %s6 = inlined_call_operand.<no memory space> [shape: f32[1,1], index: 6, kind: input, shape index: {}]
  %s7 = inlined_call_operand.vmem [shape: f32[300,1], index: 7, kind: output, shape index: {}]
  %s8 = sld [smem:[#allocation0]]
  $region109: #{tpu_custom_call.1} parent=0
    _
  %s10 = ssub.s32 1, %s8
  %s11 = scalar_select 0, %s10, %s8
  %v12 = vstv %s6
  %13 = vst [vmem:[#allocation2] sm:$0x1] %v12
  $region1: #{tpu_custom_call.1} parent=0
    #allocation3 [shape = 'u8[147456]{0}', space=vmem, size = 0x24000, scoped, tag = 'output window, operand 0']
    loop: start=0, step=1, limit=5
    $region2: #{tpu_custom_call.1} parent=1 // loop_pre_header
      _
    $region3: #{tpu_custom_call.1} parent=1 // loop_header
      %s15 = sphi 0, %s19
      %p16 = scmp.ge.s32.totalorder %s15, 5
      %s25 = sphi 0, %s27
      %s28 = sphi 0, %s25
      %s29 = sphi 0, %s28
      %s45 = sphi 0, %s29
      %s49 = sphi 0, %s49
      %s51 = sphi 0, %s49
      %s52 = sphi 0, %s51
      %s66 = sphi 0, %s52
      %s70 = sphi 0, %s70
      %s72 = sphi 0, %s70
      %s73 = sphi 0, %s72
      %s87 = sphi 0, %s73
      %s91 = sphi 0, %s91
      %s93 = sphi 0, %s91
      %s94 = sphi 0, %s93
      %s108 = sphi 0, %s94
      %s112 = sphi 0, %s112
      %s114 = sphi 0, %s112
      %s115 = sphi 0, %s114
      %s129 = sphi 0, %s115
      %s133 = sphi 0, %s133
      %s135 = sphi 0, %s133
      %s136 = sphi 0, %s135
      %s150 = sphi 0, %s136
      %s154 = sphi 0, %s154
      %s156 = sphi 0, %s154
      %s157 = sphi 0, %s156
      %s171 = sphi 0, %s157
      %s177 = sphi 0, %s179
      %s180 = sphi 0, %s177
      %s181 = sphi 0, %s180
      %s197 = sphi 0, %s181
    $region4: #{tpu_custom_call.1} parent=1 // loop_header_branch
      %18 = sbr.rel (%p16) target = $region8
    $region5: #{tpu_custom_call.1} parent=1 // loop_body
      %s20 = ssub.s32 %s15, 1
      %s21 = ssub.s32 %s15, 2
      %s22 = sadd.s32 %s15, 1
      %s23 = ssub.s32 %s15, %s22
      %p24 = scmp.eq.s32.totalorder %s23, 0
      %s26 = sadd.s32 %s25, 1
      %s27 = scalar_select %p24, %s25, %s26
      %p30 = pneg %p24
      %p31 = scmp.eq.s32.totalorder %s15, 2
      %p32 = por %p30, %p31
      %p33 = scmp.ne.s32.totalorder %s25, %s28
      %p34 = scmp.eq.s32.totalorder %s15, 0
      %p35 = por %p33, %p34
      %p36 = scmp.ne.s32.totalorder %s25, %s28
      %p37 = scmp.eq.s32.totalorder %s20, 2
      %p38 = por %p36, %p37
      %p39 = scmp.ne.s32.totalorder %s28, %s29
      %p40 = scmp.eq.s32.totalorder %s20, 0
      %p41 = por %p39, %p40
      %p42 = scmp.ne.s32.totalorder %s28, %s29
      %p43 = scmp.eq.s32.totalorder %s21, 2
      %p44 = por %p42, %p43
      %p46 = scmp.ne.s32.totalorder %s29, %s45
      %p47 = scmp.eq.s32.totalorder %s21, 0
      %p48 = por %p46, %p47
      %s50 = sadd.s32 %s49, 1
      %p53 = scmp.eq.s32.totalorder %s15, 2
      %p54 = scmp.ne.s32.totalorder %s49, %s51
      %p55 = scmp.eq.s32.totalorder %s15, 0
      %p56 = por %p54, %p55
      %p57 = scmp.ne.s32.totalorder %s49, %s51
      %p58 = scmp.eq.s32.totalorder %s20, 2
      %p59 = por %p57, %p58
      %p60 = scmp.ne.s32.totalorder %s51, %s52
      %p61 = scmp.eq.s32.totalorder %s20, 0
      %p62 = por %p60, %p61
      %p63 = scmp.ne.s32.totalorder %s51, %s52
      %p64 = scmp.eq.s32.totalorder %s21, 2
      %p65 = por %p63, %p64
      %p67 = scmp.ne.s32.totalorder %s52, %s66
      %p68 = scmp.eq.s32.totalorder %s21, 0
      %p69 = por %p67, %p68
      %s71 = sadd.s32 %s70, 1
      %p74 = scmp.eq.s32.totalorder %s15, 2
      %p75 = scmp.ne.s32.totalorder %s70, %s72
      %p76 = scmp.eq.s32.totalorder %s15, 0
      %p77 = por %p75, %p76
      %p78 = scmp.ne.s32.totalorder %s70, %s72
      %p79 = scmp.eq.s32.totalorder %s20, 2
      %p80 = por %p78, %p79
      %p81 = scmp.ne.s32.totalorder %s72, %s73
      %p82 = scmp.eq.s32.totalorder %s20, 0
      %p83 = por %p81, %p82
      %p84 = scmp.ne.s32.totalorder %s72, %s73
      %p85 = scmp.eq.s32.totalorder %s21, 2
      %p86 = por %p84, %p85
      %p88 = scmp.ne.s32.totalorder %s73, %s87
      %p89 = scmp.eq.s32.totalorder %s21, 0
      %p90 = por %p88, %p89
      %s92 = sadd.s32 %s91, 1
      %p95 = scmp.eq.s32.totalorder %s15, 2
      %p96 = scmp.ne.s32.totalorder %s91, %s93
      %p97 = scmp.eq.s32.totalorder %s15, 0
      %p98 = por %p96, %p97
      %p99 = scmp.ne.s32.totalorder %s91, %s93
      %p100 = scmp.eq.s32.totalorder %s20, 2
      %p101 = por %p99, %p100
      %p102 = scmp.ne.s32.totalorder %s93, %s94
      %p103 = scmp.eq.s32.totalorder %s20, 0
      %p104 = por %p102, %p103
      %p105 = scmp.ne.s32.totalorder %s93, %s94
      %p106 = scmp.eq.s32.totalorder %s21, 2
      %p107 = por %p105, %p106
      %p109 = scmp.ne.s32.totalorder %s94, %s108
      %p110 = scmp.eq.s32.totalorder %s21, 0
      %p111 = por %p109, %p110
      %s113 = sadd.s32 %s112, 1
      %p116 = scmp.eq.s32.totalorder %s15, 2
      %p117 = scmp.ne.s32.totalorder %s112, %s114
      %p118 = scmp.eq.s32.totalorder %s15, 0
      %p119 = por %p117, %p118
      %p120 = scmp.ne.s32.totalorder %s112, %s114
      %p121 = scmp.eq.s32.totalorder %s20, 2
      %p122 = por %p120, %p121
      %p123 = scmp.ne.s32.totalorder %s114, %s115
      %p124 = scmp.eq.s32.totalorder %s20, 0
      %p125 = por %p123, %p124
      %p126 = scmp.ne.s32.totalorder %s114, %s115
      %p127 = scmp.eq.s32.totalorder %s21, 2
      %p128 = por %p126, %p127
      %p130 = scmp.ne.s32.totalorder %s115, %s129
      %p131 = scmp.eq.s32.totalorder %s21, 0
      %p132 = por %p130, %p131
      %s134 = sadd.s32 %s133, 1
      %p137 = scmp.eq.s32.totalorder %s15, 2
      %p138 = scmp.ne.s32.totalorder %s133, %s135
      %p139 = scmp.eq.s32.totalorder %s15, 0
      %p140 = por %p138, %p139
      %p141 = scmp.ne.s32.totalorder %s133, %s135
      %p142 = scmp.eq.s32.totalorder %s20, 2
      %p143 = por %p141, %p142
      %p144 = scmp.ne.s32.totalorder %s135, %s136
      %p145 = scmp.eq.s32.totalorder %s20, 0
      %p146 = por %p144, %p145
      %p147 = scmp.ne.s32.totalorder %s135, %s136
      %p148 = scmp.eq.s32.totalorder %s21, 2
      %p149 = por %p147, %p148
      %p151 = scmp.ne.s32.totalorder %s136, %s150
      %p152 = scmp.eq.s32.totalorder %s21, 0
      %p153 = por %p151, %p152
      %s155 = sadd.s32 %s154, 1
      %p158 = scmp.eq.s32.totalorder %s15, 2
      %p159 = scmp.ne.s32.totalorder %s154, %s156
      %p160 = scmp.eq.s32.totalorder %s15, 0
      %p161 = por %p159, %p160
      %p162 = scmp.ne.s32.totalorder %s154, %s156
      %p163 = scmp.eq.s32.totalorder %s20, 2
      %p164 = por %p162, %p163
      %p165 = scmp.ne.s32.totalorder %s156, %s157
      %p166 = scmp.eq.s32.totalorder %s20, 0
      %p167 = por %p165, %p166
      %p168 = scmp.ne.s32.totalorder %s156, %s157
      %p169 = scmp.eq.s32.totalorder %s21, 2
      %p170 = por %p168, %p169
      %p172 = scmp.ne.s32.totalorder %s157, %s171
      %p173 = scmp.eq.s32.totalorder %s21, 0
      %p174 = por %p172, %p173
      %s175 = ssub.s32 %s15, %s22
      %p176 = scmp.eq.s32.totalorder %s175, 0
      %s178 = sadd.s32 %s177, 1
      %s179 = scalar_select %p176, %s177, %s178
      %p182 = pneg %p176
      %p183 = scmp.eq.s32.totalorder %s15, 2
      %p184 = por %p182, %p183
      %p185 = scmp.ne.s32.totalorder %s177, %s180
      %p186 = scmp.eq.s32.totalorder %s15, 0
      %p187 = por %p185, %p186
      %p188 = scmp.ne.s32.totalorder %s177, %s180
      %p189 = scmp.eq.s32.totalorder %s20, 2
      %p190 = por %p188, %p189
      %p191 = scmp.ne.s32.totalorder %s180, %s181
      %p192 = scmp.eq.s32.totalorder %s20, 0
      %p193 = por %p191, %p192
      %p194 = scmp.ne.s32.totalorder %s180, %s181
      %p195 = scmp.eq.s32.totalorder %s21, 2
      %p196 = por %p194, %p195
      %p198 = scmp.ne.s32.totalorder %s181, %s197
      %p199 = scmp.eq.s32.totalorder %s21, 0
      %p200 = por %p198, %p199
      %p201 = scmp.le.s32.totalorder 1, %s15
      %p202 = scmp.lt.s32.totalorder %s15, 4
      %p203 = pnand %p201, %p202
      %p204 = pneg %p203
      // Predicated region
      $region9: #{tpu_custom_call.1} parent=5 // pred_check
        _
      $region10: #{tpu_custom_call.1} parent=5 // pred_check_branch
        %206 = sbr.rel (%p203) target = $region12
      $region11: #{tpu_custom_call.1} parent=5 // pred_region
        %s207 = ssub.s32 %s15, 1
        // Predicated region
        $region13: #{tpu_custom_call.1} parent=11 // pred_check
          %p208 = pneg %p62
        $region14: #{tpu_custom_call.1} parent=11 // pred_check_branch
          %210 = sbr.rel (%p208) target = $region16
        $region15: #{tpu_custom_call.1} parent=11 // pred_region
          _
        $region16: #{tpu_custom_call.1} parent=11 // pred_fallthru
          _
        // Predicated region
        $region17: #{tpu_custom_call.1} parent=11 // pred_check
          %p211 = pneg %p83
        $region18: #{tpu_custom_call.1} parent=11 // pred_check_branch
          %213 = sbr.rel (%p211) target = $region20
        $region19: #{tpu_custom_call.1} parent=11 // pred_region
          _
        $region20: #{tpu_custom_call.1} parent=11 // pred_fallthru
          _
        // Predicated region
        $region21: #{tpu_custom_call.1} parent=11 // pred_check
          %p214 = pneg %p104
        $region22: #{tpu_custom_call.1} parent=11 // pred_check_branch
          %216 = sbr.rel (%p214) target = $region24
        $region23: #{tpu_custom_call.1} parent=11 // pred_region
          _
        $region24: #{tpu_custom_call.1} parent=11 // pred_fallthru
          _
        // Predicated region
        $region25: #{tpu_custom_call.1} parent=11 // pred_check
          %p217 = pneg %p125
        $region26: #{tpu_custom_call.1} parent=11 // pred_check_branch
          %219 = sbr.rel (%p217) target = $region28
        $region27: #{tpu_custom_call.1} parent=11 // pred_region
          _
        $region28: #{tpu_custom_call.1} parent=11 // pred_fallthru
          _
        // Predicated region
        $region29: #{tpu_custom_call.1} parent=11 // pred_check
          %p220 = pneg %p146
        $region30: #{tpu_custom_call.1} parent=11 // pred_check_branch
          %222 = sbr.rel (%p220) target = $region32
        $region31: #{tpu_custom_call.1} parent=11 // pred_region
          _
        $region32: #{tpu_custom_call.1} parent=11 // pred_fallthru
          _
        // Predicated region
        $region33: #{tpu_custom_call.1} parent=11 // pred_check
          %p223 = pneg %p167
        $region34: #{tpu_custom_call.1} parent=11 // pred_check_branch
          %225 = sbr.rel (%p223) target = $region36
        $region35: #{tpu_custom_call.1} parent=11 // pred_region
          _
        $region36: #{tpu_custom_call.1} parent=11 // pred_fallthru
          _
      $region12: #{tpu_custom_call.1} parent=5 // pred_fallthru
        _
      %p226 = scmp.lt.s32.totalorder %s15, 3
      // Predicated region
      $region37: #{tpu_custom_call.1} parent=5 // pred_check
        %p227 = pneg %p226
      $region38: #{tpu_custom_call.1} parent=5 // pred_check_branch
        %229 = sbr.rel (%p227) target = $region40
      $region39: #{tpu_custom_call.1} parent=5 // pred_region
        // Predicated region
        $region41: #{tpu_custom_call.1} parent=39 // pred_check
          %p230 = pneg %p35
        $region42: #{tpu_custom_call.1} parent=39 // pred_check_branch
          %232 = sbr.rel (%p230) target = $region44
        $region43: #{tpu_custom_call.1} parent=39 // pred_region
          %s233 = smul.u32 18, %s15
          %s234 = ssub.s32 38, %s233
          %p235 = scmp.lt.s32.totalorder %s234, 18
          %s236 = scalar_select %p235, %s234, 18
          %s237 = smul.u32 64, %s236
          %p238 = scmp.lt.s32.totalorder %s233, 37
          %s239 = scalar_select %p238, %s233, 37
          %s240 = smul.addr %s239, 4
          %s241 = scalar_lea.vmem %s0, %s240
          %s242 = smul.u32 18, %s15
          %s243 = ssub.s32 38, %s242
          %p244 = scmp.lt.s32.totalorder %s243, 18
          %s245 = scalar_select %p244, %s243, 18
          %s246 = smul.u32 64, %s245
        $region44: #{tpu_custom_call.1} parent=39 // pred_fallthru
          _
      $region40: #{tpu_custom_call.1} parent=5 // pred_fallthru
        _
      %p247 = scmp.le.s32.totalorder 1, %s15
      %p248 = scmp.lt.s32.totalorder %s15, 4
      %p249 = pnand %p247, %p248
      %p250 = pneg %p249
      // Predicated region
      $region45: #{tpu_custom_call.1} parent=5 // pred_check
        _
      $region46: #{tpu_custom_call.1} parent=5 // pred_check_branch
        %252 = sbr.rel (%p249) target = $region48
      $region47: #{tpu_custom_call.1} parent=5 // pred_region
        %s253 = ssub.s32 %s15, 1
        %s254 = smul.u32 18, %s20
        %s255 = ssub.s32 38, %s254
        %p256 = scmp.lt.s32.totalorder %s255, 18
        %s257 = scalar_select %p256, %s255, 18
        %s258 = smul.u32 64, %s257
        %p259 = scmp.lt.s32.totalorder %s254, 37
        %s260 = scalar_select %p259, %s254, 37
        %s261 = smul.addr %s260, 4
        %s262 = scalar_lea.vmem %s0, %s261
        %p263 = pneg %p41
        %p264 = pneg %p38
        %p265 = pneg %p62
        %p266 = pneg %p59
        %p267 = pneg %p83
        %p268 = pneg %p80
        %p269 = pneg %p104
        %p270 = pneg %p101
        %p271 = pneg %p125
        %p272 = pneg %p122
        %p273 = pneg %p146
        %p274 = pneg %p143
        %p275 = pneg %p167
        %p276 = pneg %p164
        %p277 = pneg %p193
        %p278 = pneg %p190
        %s279 = sand.u32 %s180, 1
        %s280 = sand.u32 %s180, 1
        %s281 = smul.addr %s280, 144
        %s282 = scalar_lea.vmem [#allocation3], %s281
        %s283 = smul.u32 18, %s20
        %s284 = ssub.s32 38, %s283
        %p285 = scmp.lt.s32.totalorder %s284, 18
        %s286 = scalar_select %p285, %s284, 18
        %s287 = smul.u32 64, %s286
        %p288 = scmp.lt.s32.totalorder %s283, 37
        %s289 = scalar_select %p288, %s283, 37
        %s290 = smul.addr %s289, 4
        %s291 = scalar_lea.vmem %s0, %s290
        %s292 = smul.u32 18, %s20
        %s293 = ssub.s32 38, %s292
        %p294 = scmp.lt.s32.totalorder %s293, 18
        %s295 = scalar_select %p294, %s293, 18
        %s296 = smul.u32 64, %s295
        %s297 = smul.u32 18, %s20
        %s298 = ssub.s32 38, %s297
        %p299 = scmp.lt.s32.totalorder %s298, 18
        %s300 = scalar_select %p299, %s298, 18
        %s301 = smul.u32 128, %s300
        %v303 = vld [vmem:[%s291] sm:$0xf]
        %v304 = vld [vmem:[%s291 + $0x4] sm:$0xf]
        %v305 = vld [vmem:[%s291 + $0x8] sm:$0xf]
        %v306 = vld [vmem:[%s291 + $0xc] sm:$0xf]
        %v307 = vld [vmem:[%s291 + $0x10] sm:$0xf]
        %v308 = vld [vmem:[%s291 + $0x14] sm:$0xf]
        %v309 = vld [vmem:[%s291 + $0x18] sm:$0xf]
        %v310 = vld [vmem:[%s291 + $0x1c] sm:$0xf]
        %v311 = vld [vmem:[%s291 + $0x20] sm:$0xf]
        %v312 = vld [vmem:[%s291 + $0x24] sm:$0xf]
        %v313 = vld [vmem:[%s291 + $0x28] sm:$0xf]
        %v314 = vld [vmem:[%s291 + $0x2c] sm:$0xf]
        %v315 = vld [vmem:[%s291 + $0x30] sm:$0xf]
        %v316 = vld [vmem:[%s291 + $0x34] sm:$0xf]
        %v317 = vld [vmem:[%s291 + $0x38] sm:$0xf]
        %v318 = vld [vmem:[%s291 + $0x3c] sm:$0xf]
        %v319 = vld [vmem:[%s291 + $0x40] sm:$0xf]
        %v320 = vld [vmem:[%s291 + $0x44] sm:$0xf]
        %v321 = vld [vmem:[%s1] sm:$0xf]
        %v322 = vld [vmem:[%s1 + $0x4] sm:$0xf]
        %v323 = vld [vmem:[%s1 + $0x8] sm:$0xf]
        %v324 = vld [vmem:[%s1 + $0xc] sm:$0xf]
        %v325 = vld [vmem:[%s1 + $0x10] sm:$0xf]
        %v326 = vld [vmem:[%s1 + $0x14] sm:$0xf]
        %v327 = vld [vmem:[%s2] sm:$0x1]
        %v329 = vlaneseq
        %v330 = vshrl.u32 %v329, 7
        %v331 = vsub.s32 0, %v330
        %v332 = vrot.slane %v327, %v331
        %v352 = vunpack.c.l.b16 %v303
        %v353 = vunpack.c.l.b16 %v304
        %v354 = vunpack.c.l.b16 %v305
        %v355 = vunpack.c.l.b16 %v306
        %v356 = vunpack.c.l.b16 %v307
        %v357 = vunpack.c.l.b16 %v308
        %v358 = vunpack.c.l.b16 %v309
        %v359 = vunpack.c.l.b16 %v310
        %v360 = vunpack.c.l.b16 %v311
        %v361 = vunpack.c.l.b16 %v312
        %v362 = vunpack.c.l.b16 %v313
        %v363 = vunpack.c.l.b16 %v314
        %v364 = vunpack.c.l.b16 %v315
        %v365 = vunpack.c.l.b16 %v316
        %v366 = vunpack.c.l.b16 %v317
        %v367 = vunpack.c.l.b16 %v318
        %v368 = vunpack.c.l.b16 %v319
        %v369 = vunpack.c.l.b16 %v320
        %v370 = vpack.c.b16 %v353, %v352
        %v371 = vpack.c.b16 %v355, %v354
        %v372 = vpack.c.b16 %v357, %v356
        %v373 = vpack.c.b16 %v359, %v358
        %v374 = vpack.c.b16 %v361, %v360
        %v375 = vpack.c.b16 %v363, %v362
        %v376 = vpack.c.b16 %v365, %v364
        %v377 = vpack.c.b16 %v367, %v366
        %v378 = vpack.c.b16 %v369, %v368
        %v385 = vunpack.c.l.b16 %v321
        %v386 = vunpack.c.l.b16 %v322
        %v387 = vunpack.c.l.b16 %v323
        %v388 = vunpack.c.l.b16 %v324
        %v389 = vunpack.c.l.b16 %v325
        %v390 = vunpack.c.l.b16 %v326
        %v391 = vpack.c.b16 %v386, %v385
        %v392 = vpack.c.b16 %v388, %v387
        %v393 = vpack.c.b16 %v390, %v389
        %vm397 = vcmask 392192
        %v399 = vsel %vm397, %v370, 0
        %v402 = vsel %vm397, %v371, 0
        %v405 = vsel %vm397, %v372, 0
        %v408 = vsel %vm397, %v373, 0
        %v411 = vsel %vm397, %v374, 0
        %v414 = vsel %vm397, %v375, 0
        %v417 = vsel %vm397, %v376, 0
        %v420 = vsel %vm397, %v377, 0
        %v423 = vsel %vm397, %v378, 0
        %425 = vmatprep.subr.bf16.mxu0 0
        %426 = vmatpush1.bf16.msra.mxu0 0
        %427 = vmatprep.subr.bf16.mxu0 0
        %428 = vmatpush1.bf16.msra.mxu0 0
        %429 = vmatprep.subr.bf16.mxu0 0
        %430 = vmatpush1.bf16.msra.mxu0 0
        %431 = vmatprep.subr.bf16.mxu0 0
        %432 = vmatpush1.bf16.msra.mxu0 0
        %433 = vmatprep.subr.bf16.mxu0 0
        %434 = vmatpush1.bf16.msra.mxu0 0
        %435 = vmatprep.subr.bf16.mxu0 0
        %436 = vmatpush1.bf16.msra.mxu0 %v393
        %437 = vmatprep.subr.bf16.mxu0 0
        %438 = vmatpush1.bf16.msra.mxu0 %v392
        %439 = vmatprep.subr.bf16.mxu0 0
        %440 = vmatpush1.bf16.msra.mxu0 %v391
        %441 = vmatprep.subr.bf16.mxu0 0
        %442 = vmatpush2.bf16.msra.mxu0 0
        %443 = vmatprep.subr.bf16.mxu0 0
        %444 = vmatpush2.bf16.msra.mxu0 0
        %445 = vmatprep.subr.bf16.mxu0 0
        %446 = vmatpush2.bf16.msra.mxu0 0
        %447 = vmatprep.subr.bf16.mxu0 0
        %448 = vmatpush2.bf16.msra.mxu0 0
        %449 = vmatprep.subr.bf16.mxu0 0
        %450 = vmatpush2.bf16.msra.mxu0 0
        %451 = vmatprep.subr.bf16.mxu0 0
        %452 = vmatpush2.bf16.msra.mxu0 0
        %453 = vmatprep.subr.bf16.mxu0 0
        %454 = vmatpush2.bf16.msra.mxu0 0
        %455 = vmatprep.subr.bf16.mxu0 0
        %456 = vmatpush2.bf16.msra.mxu0 0
        %457 = vmatprep.mubr.bf16.mxu0 0
        %458 = vmatmul.mubr.bf16.gmra.mxu0 %v399
        %v459 = vpop.f32.mrf.mxu0
        %v460 = vadd.f32 %v332, %v459
        %v461 = vpop.f32.mrf.mxu0
        %v462 = vpop.f32.mrf.mxu0
        %v463 = vadd.f32 %v332, %v462
        %v464 = vpop.f32.mrf.mxu0
        %465 = vmatprep.mubr.bf16.mxu0 0
        %466 = vmatmul.mubr.bf16.gmra.mxu0 %v402
        %v467 = vpop.f32.mrf.mxu0
        %v468 = vadd.f32 %v332, %v467
        %v469 = vpop.f32.mrf.mxu0
        %v470 = vpop.f32.mrf.mxu0
        %v471 = vadd.f32 %v332, %v470
        %v472 = vpop.f32.mrf.mxu0
        %473 = vmatprep.mubr.bf16.mxu0 0
        %474 = vmatmul.mubr.bf16.gmra.mxu0 %v405
        %v475 = vpop.f32.mrf.mxu0
        %v476 = vadd.f32 %v332, %v475
        %v477 = vpop.f32.mrf.mxu0
        %v478 = vpop.f32.mrf.mxu0
        %v479 = vadd.f32 %v332, %v478
        %v480 = vpop.f32.mrf.mxu0
        %481 = vmatprep.mubr.bf16.mxu0 0
        %482 = vmatmul.mubr.bf16.gmra.mxu0 %v408
        %v483 = vpop.f32.mrf.mxu0
        %v484 = vadd.f32 %v332, %v483
        %v485 = vpop.f32.mrf.mxu0
        %v486 = vpop.f32.mrf.mxu0
        %v487 = vadd.f32 %v332, %v486
        %v488 = vpop.f32.mrf.mxu0
        %489 = vmatprep.mubr.bf16.mxu0 0
        %490 = vmatmul.mubr.bf16.gmra.mxu0 %v411
        %v491 = vpop.f32.mrf.mxu0
        %v492 = vadd.f32 %v332, %v491
        %v493 = vpop.f32.mrf.mxu0
        %v494 = vpop.f32.mrf.mxu0
        %v495 = vadd.f32 %v332, %v494
        %v496 = vpop.f32.mrf.mxu0
        %497 = vmatprep.mubr.bf16.mxu0 0
        %498 = vmatmul.mubr.bf16.gmra.mxu0 %v414
        %v499 = vpop.f32.mrf.mxu0
        %v500 = vadd.f32 %v332, %v499
        %v501 = vpop.f32.mrf.mxu0
        %v502 = vpop.f32.mrf.mxu0
        %v503 = vadd.f32 %v332, %v502
        %v504 = vpop.f32.mrf.mxu0
        %505 = vmatprep.mubr.bf16.mxu0 0
        %506 = vmatmul.mubr.bf16.gmra.mxu0 %v417
        %v507 = vpop.f32.mrf.mxu0
        %v508 = vadd.f32 %v332, %v507
        %v509 = vpop.f32.mrf.mxu0
        %v510 = vpop.f32.mrf.mxu0
        %v511 = vadd.f32 %v332, %v510
        %v512 = vpop.f32.mrf.mxu0
        %513 = vmatprep.mubr.bf16.mxu0 0
        %514 = vmatmul.mubr.bf16.gmra.mxu0 %v420
        %v515 = vpop.f32.mrf.mxu0
        %v516 = vadd.f32 %v332, %v515
        %v517 = vpop.f32.mrf.mxu0
        %v518 = vpop.f32.mrf.mxu0
        %v519 = vadd.f32 %v332, %v518
        %v520 = vpop.f32.mrf.mxu0
        %521 = vmatprep.mubr.bf16.mxu0 0
        %522 = vmatmul.mubr.bf16.gmra.mxu0 %v423
        %v523 = vpop.f32.mrf.mxu0
        %v524 = vadd.f32 %v332, %v523
        %v525 = vpop.f32.mrf.mxu0
        %v526 = vpop.f32.mrf.mxu0
        %v527 = vadd.f32 %v332, %v526
        %v528 = vpop.f32.mrf.mxu0
        %529 = vdwg.mxu0
        %v530 = vmax.f32 %v460, 0.0
        %v531 = vmax.f32 %v463, 0.0
        %v532 = vmax.f32 %v468, 0.0
        %v533 = vmax.f32 %v471, 0.0
        %v534 = vmax.f32 %v476, 0.0
        %v535 = vmax.f32 %v479, 0.0
        %v536 = vmax.f32 %v484, 0.0
        %v537 = vmax.f32 %v487, 0.0
        %v538 = vmax.f32 %v492, 0.0
        %v539 = vmax.f32 %v495, 0.0
        %v540 = vmax.f32 %v500, 0.0
        %v541 = vmax.f32 %v503, 0.0
        %v542 = vmax.f32 %v508, 0.0
        %v543 = vmax.f32 %v511, 0.0
        %v544 = vmax.f32 %v516, 0.0
        %v545 = vmax.f32 %v519, 0.0
        %v546 = vmax.f32 %v524, 0.0
        %v547 = vmax.f32 %v527, 0.0
        %v548 = vpack.c.bf16 %v531, %v530
        %v549 = vpack.c.bf16 %v533, %v532
        %v550 = vpack.c.bf16 %v535, %v534
        %v551 = vpack.c.bf16 %v537, %v536
        %v552 = vpack.c.bf16 %v539, %v538
        %v553 = vpack.c.bf16 %v541, %v540
        %v554 = vpack.c.bf16 %v543, %v542
        %v555 = vpack.c.bf16 %v545, %v544
        %v556 = vpack.c.bf16 %v547, %v546
        %v557 = vld [vmem:[%s3] sm:$0xf]
        %v558 = vld [vmem:[%s3 + $0x4] sm:$0xf]
        %v559 = vld [vmem:[%s3 + $0x8] sm:$0xf]
        %v560 = vld [vmem:[%s3 + $0xc] sm:$0xf]
        %v561 = vld [vmem:[%s3 + $0x10] sm:$0xf]
        %v562 = vld [vmem:[%s3 + $0x14] sm:$0xf]
        %v563 = vld [vmem:[%s3 + $0x18] sm:$0xf]
        %v564 = vld [vmem:[%s3 + $0x1c] sm:$0xf]
        %v565 = vld [vmem:[%s4] sm:$0x1]
        %v567 = vlaneseq
        %v568 = vshrl.u32 %v567, 7
        %v569 = vsub.s32 0, %v568
        %v570 = vrot.slane %v565, %v569
        %v580 = vunpack.c.l.b16 %v557
        %v581 = vunpack.c.l.b16 %v558
        %v582 = vunpack.c.l.b16 %v559
        %v583 = vunpack.c.l.b16 %v560
        %v584 = vunpack.c.l.b16 %v561
        %v585 = vunpack.c.l.b16 %v562
        %v586 = vunpack.c.l.b16 %v563
        %v587 = vunpack.c.l.b16 %v564
        %v588 = vpack.c.b16 %v581, %v580
        %v589 = vpack.c.b16 %v583, %v582
        %v590 = vpack.c.b16 %v585, %v584
        %v591 = vpack.c.b16 %v587, %v586
        %vm596 = vcmask 523264
        %v598 = vsel %vm596, %v548, 0
        %v601 = vsel %vm596, %v549, 0
        %v604 = vsel %vm596, %v550, 0
        %v607 = vsel %vm596, %v551, 0
        %v610 = vsel %vm596, %v552, 0
        %v613 = vsel %vm596, %v553, 0
        %v616 = vsel %vm596, %v554, 0
        %v619 = vsel %vm596, %v555, 0
        %v622 = vsel %vm596, %v556, 0
        %624 = vmatprep.subr.bf16.mxu0 0
        %625 = vmatpush1.bf16.msra.mxu0 0
        %626 = vmatprep.subr.bf16.mxu0 0
        %627 = vmatpush1.bf16.msra.mxu0 0
        %628 = vmatprep.subr.bf16.mxu0 0
        %629 = vmatpush1.bf16.msra.mxu0 0
        %630 = vmatprep.subr.bf16.mxu0 0
        %631 = vmatpush1.bf16.msra.mxu0 0
        %632 = vmatprep.subr.bf16.mxu0 0
        %633 = vmatpush1.bf16.msra.mxu0 %v591
        %634 = vmatprep.subr.bf16.mxu0 0
        %635 = vmatpush1.bf16.msra.mxu0 %v590
        %636 = vmatprep.subr.bf16.mxu0 0
        %637 = vmatpush1.bf16.msra.mxu0 %v589
        %638 = vmatprep.subr.bf16.mxu0 0
        %639 = vmatpush1.bf16.msra.mxu0 %v588
        %640 = vmatprep.subr.bf16.mxu0 0
        %641 = vmatpush2.bf16.msra.mxu0 0
        %642 = vmatprep.subr.bf16.mxu0 0
        %643 = vmatpush2.bf16.msra.mxu0 0
        %644 = vmatprep.subr.bf16.mxu0 0
        %645 = vmatpush2.bf16.msra.mxu0 0
        %646 = vmatprep.subr.bf16.mxu0 0
        %647 = vmatpush2.bf16.msra.mxu0 0
        %648 = vmatprep.subr.bf16.mxu0 0
        %649 = vmatpush2.bf16.msra.mxu0 0
        %650 = vmatprep.subr.bf16.mxu0 0
        %651 = vmatpush2.bf16.msra.mxu0 0
        %652 = vmatprep.subr.bf16.mxu0 0
        %653 = vmatpush2.bf16.msra.mxu0 0
        %654 = vmatprep.subr.bf16.mxu0 0
        %655 = vmatpush2.bf16.msra.mxu0 0
        %656 = vmatprep.mubr.bf16.mxu0 0
        %657 = vmatmul.mubr.bf16.gmra.mxu0 %v598
        %v658 = vpop.f32.mrf.mxu0
        %v659 = vadd.f32 %v570, %v658
        %v660 = vpop.f32.mrf.mxu0
        %v661 = vpop.f32.mrf.mxu0
        %v662 = vadd.f32 %v570, %v661
        %v663 = vpop.f32.mrf.mxu0
        %664 = vmatprep.mubr.bf16.mxu0 0
        %665 = vmatmul.mubr.bf16.gmra.mxu0 %v601
        %v666 = vpop.f32.mrf.mxu0
        %v667 = vadd.f32 %v570, %v666
        %v668 = vpop.f32.mrf.mxu0
        %v669 = vpop.f32.mrf.mxu0
        %v670 = vadd.f32 %v570, %v669
        %v671 = vpop.f32.mrf.mxu0
        %672 = vmatprep.mubr.bf16.mxu0 0
        %673 = vmatmul.mubr.bf16.gmra.mxu0 %v604
        %v674 = vpop.f32.mrf.mxu0
        %v675 = vadd.f32 %v570, %v674
        %v676 = vpop.f32.mrf.mxu0
        %v677 = vpop.f32.mrf.mxu0
        %v678 = vadd.f32 %v570, %v677
        %v679 = vpop.f32.mrf.mxu0
        %680 = vmatprep.mubr.bf16.mxu0 0
        %681 = vmatmul.mubr.bf16.gmra.mxu0 %v607
        %v682 = vpop.f32.mrf.mxu0
        %v683 = vadd.f32 %v570, %v682
        %v684 = vpop.f32.mrf.mxu0
        %v685 = vpop.f32.mrf.mxu0
        %v686 = vadd.f32 %v570, %v685
        %v687 = vpop.f32.mrf.mxu0
        %688 = vmatprep.mubr.bf16.mxu0 0
        %689 = vmatmul.mubr.bf16.gmra.mxu0 %v610
        %v690 = vpop.f32.mrf.mxu0
        %v691 = vadd.f32 %v570, %v690
        %v692 = vpop.f32.mrf.mxu0
        %v693 = vpop.f32.mrf.mxu0
        %v694 = vadd.f32 %v570, %v693
        %v695 = vpop.f32.mrf.mxu0
        %696 = vmatprep.mubr.bf16.mxu0 0
        %697 = vmatmul.mubr.bf16.gmra.mxu0 %v613
        %v698 = vpop.f32.mrf.mxu0
        %v699 = vadd.f32 %v570, %v698
        %v700 = vpop.f32.mrf.mxu0
        %v701 = vpop.f32.mrf.mxu0
        %v702 = vadd.f32 %v570, %v701
        %v703 = vpop.f32.mrf.mxu0
        %704 = vmatprep.mubr.bf16.mxu0 0
        %705 = vmatmul.mubr.bf16.gmra.mxu0 %v616
        %v706 = vpop.f32.mrf.mxu0
        %v707 = vadd.f32 %v570, %v706
        %v708 = vpop.f32.mrf.mxu0
        %v709 = vpop.f32.mrf.mxu0
        %v710 = vadd.f32 %v570, %v709
        %v711 = vpop.f32.mrf.mxu0
        %712 = vmatprep.mubr.bf16.mxu0 0
        %713 = vmatmul.mubr.bf16.gmra.mxu0 %v619
        %v714 = vpop.f32.mrf.mxu0
        %v715 = vadd.f32 %v570, %v714
        %v716 = vpop.f32.mrf.mxu0
        %v717 = vpop.f32.mrf.mxu0
        %v718 = vadd.f32 %v570, %v717
        %v719 = vpop.f32.mrf.mxu0
        %720 = vmatprep.mubr.bf16.mxu0 0
        %721 = vmatmul.mubr.bf16.gmra.mxu0 %v622
        %v722 = vpop.f32.mrf.mxu0
        %v723 = vadd.f32 %v570, %v722
        %v724 = vpop.f32.mrf.mxu0
        %v725 = vpop.f32.mrf.mxu0
        %v726 = vadd.f32 %v570, %v725
        %v727 = vpop.f32.mrf.mxu0
        %728 = vdwg.mxu0
        %v729 = vmax.f32 %v659, 0.0
        %v730 = vmax.f32 %v662, 0.0
        %v731 = vmax.f32 %v667, 0.0
        %v732 = vmax.f32 %v670, 0.0
        %v733 = vmax.f32 %v675, 0.0
        %v734 = vmax.f32 %v678, 0.0
        %v735 = vmax.f32 %v683, 0.0
        %v736 = vmax.f32 %v686, 0.0
        %v737 = vmax.f32 %v691, 0.0
        %v738 = vmax.f32 %v694, 0.0
        %v739 = vmax.f32 %v699, 0.0
        %v740 = vmax.f32 %v702, 0.0
        %v741 = vmax.f32 %v707, 0.0
        %v742 = vmax.f32 %v710, 0.0
        %v743 = vmax.f32 %v715, 0.0
        %v744 = vmax.f32 %v718, 0.0
        %v745 = vmax.f32 %v723, 0.0
        %v746 = vmax.f32 %v726, 0.0
        %v747 = vld [vmem:[%s5] sm:$0x1]
        %v749 = vlaneseq
        %v750 = vshrl.u32 %v749, 7
        %v751 = vsub.s32 0, %v750
        %v752 = vrot.slane %v747, %v751
        %v754 = vmul.f32 %v729, %v752
        %v755 = vmul.f32 %v730, %v752
        %v756 = vmul.f32 %v731, %v752
        %v757 = vmul.f32 %v732, %v752
        %v758 = vmul.f32 %v733, %v752
        %v759 = vmul.f32 %v734, %v752
        %v760 = vmul.f32 %v735, %v752
        %v761 = vmul.f32 %v736, %v752
        %v762 = vmul.f32 %v737, %v752
        %v763 = vmul.f32 %v738, %v752
        %v764 = vmul.f32 %v739, %v752
        %v765 = vmul.f32 %v740, %v752
        %v766 = vmul.f32 %v741, %v752
        %v767 = vmul.f32 %v742, %v752
        %v768 = vmul.f32 %v743, %v752
        %v769 = vmul.f32 %v744, %v752
        %v770 = vmul.f32 %v745, %v752
        %v771 = vmul.f32 %v746, %v752
        %v772 = vsel %vm596, %v754, 0.0
        %773 = vadd.xlane.f32.xlu0 %v772
        %v774 = vpop.xlane.xlu0 %773
        %v775 = vsel %vm596, %v755, 0.0
        %776 = vadd.xlane.f32.xlu0 %v775
        %v777 = vpop.xlane.xlu0 %776
        %v778 = vsel %vm596, %v756, 0.0
        %779 = vadd.xlane.f32.xlu0 %v778
        %v780 = vpop.xlane.xlu0 %779
        %v781 = vsel %vm596, %v757, 0.0
        %782 = vadd.xlane.f32.xlu0 %v781
        %v783 = vpop.xlane.xlu0 %782
        %v784 = vsel %vm596, %v758, 0.0
        %785 = vadd.xlane.f32.xlu0 %v784
        %v786 = vpop.xlane.xlu0 %785
        %v787 = vsel %vm596, %v759, 0.0
        %788 = vadd.xlane.f32.xlu0 %v787
        %v789 = vpop.xlane.xlu0 %788
        %v790 = vsel %vm596, %v760, 0.0
        %791 = vadd.xlane.f32.xlu0 %v790
        %v792 = vpop.xlane.xlu0 %791
        %v793 = vsel %vm596, %v761, 0.0
        %794 = vadd.xlane.f32.xlu0 %v793
        %v795 = vpop.xlane.xlu0 %794
        %v796 = vsel %vm596, %v762, 0.0
        %797 = vadd.xlane.f32.xlu0 %v796
        %v798 = vpop.xlane.xlu0 %797
        %v799 = vsel %vm596, %v763, 0.0
        %800 = vadd.xlane.f32.xlu0 %v799
        %v801 = vpop.xlane.xlu0 %800
        %v802 = vsel %vm596, %v764, 0.0
        %803 = vadd.xlane.f32.xlu0 %v802
        %v804 = vpop.xlane.xlu0 %803
        %v805 = vsel %vm596, %v765, 0.0
        %806 = vadd.xlane.f32.xlu0 %v805
        %v807 = vpop.xlane.xlu0 %806
        %v808 = vsel %vm596, %v766, 0.0
        %809 = vadd.xlane.f32.xlu0 %v808
        %v810 = vpop.xlane.xlu0 %809
        %v811 = vsel %vm596, %v767, 0.0
        %812 = vadd.xlane.f32.xlu0 %v811
        %v813 = vpop.xlane.xlu0 %812
        %v814 = vsel %vm596, %v768, 0.0
        %815 = vadd.xlane.f32.xlu0 %v814
        %v816 = vpop.xlane.xlu0 %815
        %v817 = vsel %vm596, %v769, 0.0
        %818 = vadd.xlane.f32.xlu0 %v817
        %v819 = vpop.xlane.xlu0 %818
        %v820 = vsel %vm596, %v770, 0.0
        %821 = vadd.xlane.f32.xlu0 %v820
        %v822 = vpop.xlane.xlu0 %821
        %v823 = vsel %vm596, %v771, 0.0
        %824 = vadd.xlane.f32.xlu0 %v823
        %v825 = vpop.xlane.xlu0 %824
        %v826 = vld [vmem:[#allocation2] sm:$0x1]
        %v828 = vlaneseq
        %v829 = vshrl.u32 %v828, 7
        %v830 = vsub.s32 0, %v829
        %v831 = vrot.slane %v826, %v830
        %v833 = vadd.f32 %v774, %v831
        %v834 = vadd.f32 %v777, %v831
        %v835 = vadd.f32 %v780, %v831
        %v836 = vadd.f32 %v783, %v831
        %v837 = vadd.f32 %v786, %v831
        %v838 = vadd.f32 %v789, %v831
        %v839 = vadd.f32 %v792, %v831
        %v840 = vadd.f32 %v795, %v831
        %v841 = vadd.f32 %v798, %v831
        %v842 = vadd.f32 %v801, %v831
        %v843 = vadd.f32 %v804, %v831
        %v844 = vadd.f32 %v807, %v831
        %v845 = vadd.f32 %v810, %v831
        %v846 = vadd.f32 %v813, %v831
        %v847 = vadd.f32 %v816, %v831
        %v848 = vadd.f32 %v819, %v831
        %v849 = vadd.f32 %v822, %v831
        %v850 = vadd.f32 %v825, %v831
        %vm851 = vcmask 7168
        %852 = vst.msk [vmem:[%s282] sm:$0xff] %vm851, %v833
        %853 = vst.msk [vmem:[%s282 + $0x8] sm:$0xff] %vm851, %v834
        %854 = vst.msk [vmem:[%s282 + $0x10] sm:$0xff] %vm851, %v835
        %855 = vst.msk [vmem:[%s282 + $0x18] sm:$0xff] %vm851, %v836
        %856 = vst.msk [vmem:[%s282 + $0x20] sm:$0xff] %vm851, %v837
        %857 = vst.msk [vmem:[%s282 + $0x28] sm:$0xff] %vm851, %v838
        %858 = vst.msk [vmem:[%s282 + $0x30] sm:$0xff] %vm851, %v839
        %859 = vst.msk [vmem:[%s282 + $0x38] sm:$0xff] %vm851, %v840
        %860 = vst.msk [vmem:[%s282 + $0x40] sm:$0xff] %vm851, %v841
        %861 = vst.msk [vmem:[%s282 + $0x48] sm:$0xff] %vm851, %v842
        %862 = vst.msk [vmem:[%s282 + $0x50] sm:$0xff] %vm851, %v843
        %863 = vst.msk [vmem:[%s282 + $0x58] sm:$0xff] %vm851, %v844
        %864 = vst.msk [vmem:[%s282 + $0x60] sm:$0xff] %vm851, %v845
        %865 = vst.msk [vmem:[%s282 + $0x68] sm:$0xff] %vm851, %v846
        %866 = vst.msk [vmem:[%s282 + $0x70] sm:$0xff] %vm851, %v847
        %867 = vst.msk [vmem:[%s282 + $0x78] sm:$0xff] %vm851, %v848
        %868 = vst.msk [vmem:[%s282 + $0x80] sm:$0xff] %vm851, %v849
        %869 = vst.msk [vmem:[%s282 + $0x88] sm:$0xff] %vm851, %v850
        %s870 = sand.u32 %s180, 1
        %s871 = sand.u32 %s180, 1
        %s872 = smul.addr %s871, 144
        %s873 = scalar_lea.vmem [#allocation3], %s872
        // Predicated region
        $region49: #{tpu_custom_call.1} parent=47 // pred_check
          %p874 = pneg %p190
        $region50: #{tpu_custom_call.1} parent=47 // pred_check_branch
          %876 = sbr.rel (%p874) target = $region52
        $region51: #{tpu_custom_call.1} parent=47 // pred_region
          %s877 = smul.u32 18, %s20
          %s878 = ssub.s32 38, %s877
          %p879 = scmp.lt.s32.totalorder %s878, 18
          %s880 = scalar_select %p879, %s878, 18
          %s881 = smul.u32 128, %s880
          %p882 = scmp.ne.s32.totalorder 0, %s881
          %s883 = smul.addr %s877, 8
          %s884 = scalar_lea.vmem %s7, %s883
          // Predicated region
          $region53: #{tpu_custom_call.1} parent=51 // pred_check
            %p885 = pneg %p882
          $region54: #{tpu_custom_call.1} parent=51 // pred_check_branch
            %887 = sbr.rel (%p885) target = $region56
          $region55: #{tpu_custom_call.1} parent=51 // pred_region
            // Predicated region
            $region57: #{tpu_custom_call.1} parent=55 // pred_check
              _
            $region58: #{tpu_custom_call.1} parent=55 // pred_check_branch
              %889 = sbr.rel (0) target = $region60
            $region59: #{tpu_custom_call.1} parent=55 // pred_region
              // Predicated region
              $region79: #{tpu_custom_call.1} parent=59 // pred_check
                _
              $region80: #{tpu_custom_call.1} parent=59 // pred_check_branch
                %974 = sbr.rel (0) target = $region82
              $region81: #{tpu_custom_call.1} parent=59 // pred_region
                %s975 = sdiv.u32.pop %s880, 18
                %s976 = srem.u32.pop %s880, 18
                // While loop
                $region83: #{tpu_custom_call.1} parent=81 // loop_pre_header
                  _
                $region84: #{tpu_custom_call.1} parent=81 // loop_header
                  %s978 = sphi 0, %s980
                  %p979 = scmp.ge.s32.totalorder %s978, %s975
                  %s983 = sphi 0, %s1024
                  %s984 = sphi %s873, %s1027
                  %s985 = sphi %s884, %s1028
                $region85: #{tpu_custom_call.1} parent=81 // loop_header_branch
                  %982 = sbr.rel (%p979) target = $region89
                $region86: #{tpu_custom_call.1} parent=81 // loop_body
                  %v986 = vld [vmem:[%s984] sm:$0xff]
                  %987 = vst [vmem:[%s985] sm:$0xff] %v986
                  %v988 = vld [vmem:[%s984 + $0x8] sm:$0xff]
                  %989 = vst [vmem:[%s985 + $0x8] sm:$0xff] %v988
                  %v990 = vld [vmem:[%s984 + $0x10] sm:$0xff]
                  %991 = vst [vmem:[%s985 + $0x10] sm:$0xff] %v990
                  %v992 = vld [vmem:[%s984 + $0x18] sm:$0xff]
                  %993 = vst [vmem:[%s985 + $0x18] sm:$0xff] %v992
                  %v994 = vld [vmem:[%s984 + $0x20] sm:$0xff]
                  %995 = vst [vmem:[%s985 + $0x20] sm:$0xff] %v994
                  %v996 = vld [vmem:[%s984 + $0x28] sm:$0xff]
                  %997 = vst [vmem:[%s985 + $0x28] sm:$0xff] %v996
                  %v998 = vld [vmem:[%s984 + $0x30] sm:$0xff]
                  %999 = vst [vmem:[%s985 + $0x30] sm:$0xff] %v998
                  %v1000 = vld [vmem:[%s984 + $0x38] sm:$0xff]
                  %1001 = vst [vmem:[%s985 + $0x38] sm:$0xff] %v1000
                  %v1002 = vld [vmem:[%s984 + $0x40] sm:$0xff]
                  %1003 = vst [vmem:[%s985 + $0x40] sm:$0xff] %v1002
                  %v1004 = vld [vmem:[%s984 + $0x48] sm:$0xff]
                  %1005 = vst [vmem:[%s985 + $0x48] sm:$0xff] %v1004
                  %v1006 = vld [vmem:[%s984 + $0x50] sm:$0xff]
                  %1007 = vst [vmem:[%s985 + $0x50] sm:$0xff] %v1006
                  %v1008 = vld [vmem:[%s984 + $0x58] sm:$0xff]
                  %1009 = vst [vmem:[%s985 + $0x58] sm:$0xff] %v1008
                  %v1010 = vld [vmem:[%s984 + $0x60] sm:$0xff]
                  %1011 = vst [vmem:[%s985 + $0x60] sm:$0xff] %v1010
                  %v1012 = vld [vmem:[%s984 + $0x68] sm:$0xff]
                  %1013 = vst [vmem:[%s985 + $0x68] sm:$0xff] %v1012
                  %v1014 = vld [vmem:[%s984 + $0x70] sm:$0xff]
                  %1015 = vst [vmem:[%s985 + $0x70] sm:$0xff] %v1014
                  %v1016 = vld [vmem:[%s984 + $0x78] sm:$0xff]
                  %1017 = vst [vmem:[%s985 + $0x78] sm:$0xff] %v1016
                  %v1018 = vld [vmem:[%s984 + $0x80] sm:$0xff]
                  %1019 = vst [vmem:[%s985 + $0x80] sm:$0xff] %v1018
                  %v1020 = vld [vmem:[%s984 + $0x88] sm:$0xff]
                  %1021 = vst [vmem:[%s985 + $0x88] sm:$0xff] %v1020
                  %s1022 = sadd.s32 1, %s983
                  %p1023 = scmp.ge.s32.totalorder %s1022, %s975
                  %s1024 = scalar_select %p1023, 0, %s1022
                  %s1025 = smul.u32 %s1024, 144
                  %s1026 = smul.u32 %s1024, 144
                  %s1027 = scalar_lea.vmem %s873, %s1025 [#allocation3]
                  %s1028 = scalar_lea.vmem %s884, %s1026
                $region87: #{tpu_custom_call.1} parent=81 // loop_footer
                  %s980 = sadd.s32 %s978, 1
                $region88: #{tpu_custom_call.1} parent=81 // loop_footer_branch
                  %977 = sbr.rel target = $region84
                $region89: #{tpu_custom_call.1} parent=81 // loop_exit
                  _
                %s1029 = sdiv.u32.pop %s880, 18
                %s1030 = srem.u32.pop %s880, 18
                %s1031 = smul.u32 %s1029, 18
                %s1032 = smul.u32 8, %s1031
                %s1033 = scalar_lea.vmem %s873, %s1032 [#allocation3]
                %s1034 = smul.u32 8, %s1031
                %s1035 = scalar_lea.vmem %s884, %s1034
                // While loop
                $region90: #{tpu_custom_call.1} parent=81 // loop_pre_header
                  _
                $region91: #{tpu_custom_call.1} parent=81 // loop_header
                  %s1037 = sphi 0, %s1039
                  %p1038 = scmp.ge.s32.totalorder %s1037, %s1030
                  %s1042 = sphi 0, %s1049
                  %s1043 = sphi %s1033, %s1052
                  %s1044 = sphi %s1035, %s1053
                $region92: #{tpu_custom_call.1} parent=81 // loop_header_branch
                  %1041 = sbr.rel (%p1038) target = $region96
                $region93: #{tpu_custom_call.1} parent=81 // loop_body
                  %v1045 = vld [vmem:[%s1043] sm:$0xff]
                  %1046 = vst [vmem:[%s1044] sm:$0xff] %v1045
                  %s1047 = sadd.s32 1, %s1042
                  %p1048 = scmp.ge.s32.totalorder %s1047, %s1030
                  %s1049 = scalar_select %p1048, 0, %s1047
                  %s1050 = smul.u32 %s1049, 8
                  %s1051 = smul.u32 %s1049, 8
                  %s1052 = scalar_lea.vmem %s1033, %s1050 [#allocation3]
                  %s1053 = scalar_lea.vmem %s1035, %s1051
                $region94: #{tpu_custom_call.1} parent=81 // loop_footer
                  %s1039 = sadd.s32 %s1037, 1
                $region95: #{tpu_custom_call.1} parent=81 // loop_footer_branch
                  %1036 = sbr.rel target = $region91
                $region96: #{tpu_custom_call.1} parent=81 // loop_exit
                  _
              $region82: #{tpu_custom_call.1} parent=59 // pred_fallthru
                _
              // Predicated region
              $region97: #{tpu_custom_call.1} parent=59 // pred_check
                _
              $region98: #{tpu_custom_call.1} parent=59 // pred_check_branch
                %1055 = sbr.rel target = $region100
              $region99: #{tpu_custom_call.1} parent=59 // pred_region
                _
              $region100: #{tpu_custom_call.1} parent=59 // pred_fallthru
                _
            $region60: #{tpu_custom_call.1} parent=55 // pred_fallthru
              _
            // Predicated region
            $region61: #{tpu_custom_call.1} parent=55 // pred_check
              _
            $region62: #{tpu_custom_call.1} parent=55 // pred_check_branch
              %891 = sbr.rel target = $region64
            $region63: #{tpu_custom_call.1} parent=55 // pred_region
              %s893 = ssub.s32 256, 1
              %s894 = sdiv.u32.pop %s880, 18
              %s895 = srem.u32.pop %s880, 18
              // While loop
              $region65: #{tpu_custom_call.1} parent=63 // loop_pre_header
                _
              $region66: #{tpu_custom_call.1} parent=63 // loop_header
                %s897 = sphi 0, %s899
                %p898 = scmp.ge.s32.totalorder %s897, %s894
                %s902 = sphi 0, %s943
                %s903 = sphi %s873, %s946
                %s904 = sphi %s884, %s947
              $region67: #{tpu_custom_call.1} parent=63 // loop_header_branch
                %901 = sbr.rel (%p898) target = $region71
              $region68: #{tpu_custom_call.1} parent=63 // loop_body
                %v905 = vld [vmem:[%s903] sm:%s893]
                %906 = vst [vmem:[%s904] sm:%s893] %v905
                %v907 = vld [vmem:[%s903 + $0x8] sm:%s893]
                %908 = vst [vmem:[%s904 + $0x8] sm:%s893] %v907
                %v909 = vld [vmem:[%s903 + $0x10] sm:%s893]
                %910 = vst [vmem:[%s904 + $0x10] sm:%s893] %v909
                %v911 = vld [vmem:[%s903 + $0x18] sm:%s893]
                %912 = vst [vmem:[%s904 + $0x18] sm:%s893] %v911
                %v913 = vld [vmem:[%s903 + $0x20] sm:%s893]
                %914 = vst [vmem:[%s904 + $0x20] sm:%s893] %v913
                %v915 = vld [vmem:[%s903 + $0x28] sm:%s893]
                %916 = vst [vmem:[%s904 + $0x28] sm:%s893] %v915
                %v917 = vld [vmem:[%s903 + $0x30] sm:%s893]
                %918 = vst [vmem:[%s904 + $0x30] sm:%s893] %v917
                %v919 = vld [vmem:[%s903 + $0x38] sm:%s893]
                %920 = vst [vmem:[%s904 + $0x38] sm:%s893] %v919
                %v921 = vld [vmem:[%s903 + $0x40] sm:%s893]
                %922 = vst [vmem:[%s904 + $0x40] sm:%s893] %v921
                %v923 = vld [vmem:[%s903 + $0x48] sm:%s893]
                %924 = vst [vmem:[%s904 + $0x48] sm:%s893] %v923
                %v925 = vld [vmem:[%s903 + $0x50] sm:%s893]
                %926 = vst [vmem:[%s904 + $0x50] sm:%s893] %v925
                %v927 = vld [vmem:[%s903 + $0x58] sm:%s893]
                %928 = vst [vmem:[%s904 + $0x58] sm:%s893] %v927
                %v929 = vld [vmem:[%s903 + $0x60] sm:%s893]
                %930 = vst [vmem:[%s904 + $0x60] sm:%s893] %v929
                %v931 = vld [vmem:[%s903 + $0x68] sm:%s893]
                %932 = vst [vmem:[%s904 + $0x68] sm:%s893] %v931
                %v933 = vld [vmem:[%s903 + $0x70] sm:%s893]
                %934 = vst [vmem:[%s904 + $0x70] sm:%s893] %v933
                %v935 = vld [vmem:[%s903 + $0x78] sm:%s893]
                %936 = vst [vmem:[%s904 + $0x78] sm:%s893] %v935
                %v937 = vld [vmem:[%s903 + $0x80] sm:%s893]
                %938 = vst [vmem:[%s904 + $0x80] sm:%s893] %v937
                %v939 = vld [vmem:[%s903 + $0x88] sm:%s893]
                %940 = vst [vmem:[%s904 + $0x88] sm:%s893] %v939
                %s941 = sadd.s32 1, %s902
                %p942 = scmp.ge.s32.totalorder %s941, %s894
                %s943 = scalar_select %p942, 0, %s941
                %s944 = smul.u32 %s943, 144
                %s945 = smul.u32 %s943, 144
                %s946 = scalar_lea.vmem %s873, %s944 [#allocation3]
                %s947 = scalar_lea.vmem %s884, %s945
              $region69: #{tpu_custom_call.1} parent=63 // loop_footer
                %s899 = sadd.s32 %s897, 1
              $region70: #{tpu_custom_call.1} parent=63 // loop_footer_branch
                %896 = sbr.rel target = $region66
              $region71: #{tpu_custom_call.1} parent=63 // loop_exit
                _
              %s948 = sdiv.u32.pop %s880, 18
              %s949 = srem.u32.pop %s880, 18
              %s950 = smul.u32 %s948, 18
              %s951 = smul.u32 8, %s950
              %s952 = scalar_lea.vmem %s873, %s951 [#allocation3]
              %s953 = smul.u32 8, %s950
              %s954 = scalar_lea.vmem %s884, %s953
              // While loop
              $region72: #{tpu_custom_call.1} parent=63 // loop_pre_header
                _
              $region73: #{tpu_custom_call.1} parent=63 // loop_header
                %s956 = sphi 0, %s958
                %p957 = scmp.ge.s32.totalorder %s956, %s949
                %s961 = sphi 0, %s968
                %s962 = sphi %s952, %s971
                %s963 = sphi %s954, %s972
              $region74: #{tpu_custom_call.1} parent=63 // loop_header_branch
                %960 = sbr.rel (%p957) target = $region78
              $region75: #{tpu_custom_call.1} parent=63 // loop_body
                %v964 = vld [vmem:[%s962] sm:%s893]
                %965 = vst [vmem:[%s963] sm:%s893] %v964
                %s966 = sadd.s32 1, %s961
                %p967 = scmp.ge.s32.totalorder %s966, %s949
                %s968 = scalar_select %p967, 0, %s966
                %s969 = smul.u32 %s968, 8
                %s970 = smul.u32 %s968, 8
                %s971 = scalar_lea.vmem %s952, %s969 [#allocation3]
                %s972 = scalar_lea.vmem %s954, %s970
              $region76: #{tpu_custom_call.1} parent=63 // loop_footer
                %s958 = sadd.s32 %s956, 1
              $region77: #{tpu_custom_call.1} parent=63 // loop_footer_branch
                %955 = sbr.rel target = $region73
              $region78: #{tpu_custom_call.1} parent=63 // loop_exit
                _
            $region64: #{tpu_custom_call.1} parent=55 // pred_fallthru
              _
          $region56: #{tpu_custom_call.1} parent=51 // pred_fallthru
            _
          %1056 = vnop
        $region52: #{tpu_custom_call.1} parent=47 // pred_fallthru
          _
      $region48: #{tpu_custom_call.1} parent=5 // pred_fallthru
        _
      %p1057 = scmp.le.s32.totalorder 2, %s15
      // Predicated region
      $region101: #{tpu_custom_call.1} parent=5 // pred_check
        %p1058 = pneg %p1057
      $region102: #{tpu_custom_call.1} parent=5 // pred_check_branch
        %1060 = sbr.rel (%p1058) target = $region104
      $region103: #{tpu_custom_call.1} parent=5 // pred_region
        %s1061 = ssub.s32 %s15, 2
        // Predicated region
        $region105: #{tpu_custom_call.1} parent=103 // pred_check
          %p1062 = pneg %p196
        $region106: #{tpu_custom_call.1} parent=103 // pred_check_branch
          %1064 = sbr.rel (%p1062) target = $region108
        $region107: #{tpu_custom_call.1} parent=103 // pred_region
          %s1065 = sand.u32 %s181, 1
          %s1066 = sand.u32 %s181, 1
          %s1067 = smul.addr %s1066, 144
          %s1068 = scalar_lea.vmem [#allocation3], %s1067
        $region108: #{tpu_custom_call.1} parent=103 // pred_fallthru
          _
      $region104: #{tpu_custom_call.1} parent=5 // pred_fallthru
        _
    $region6: #{tpu_custom_call.1} parent=1 // loop_footer
      %s19 = sadd.s32 1, %s15
    $region7: #{tpu_custom_call.1} parent=1 // loop_footer_branch
      %14 = sbr.rel target = $region3
    $region8: #{tpu_custom_call.1} parent=1 // loop_exit
      _

</llo_original>
